<compile_context>
chip_gen: v7x
topology: tpu7x:2x2x1
jax: 0.10.0
libtpu: 0.0.40
codegen_flags: <defaults>
</compile_context>

<pallas_src>
import functools

import jax
import jax.numpy as jnp
import numpy as np
from jax.experimental import pallas as pl
from jax.experimental.pallas import tpu as pltpu


def _modmbstd_kernel(x_ref, feat_ref, *, inv_count, eps):
    """One (sublane-tile, lane-tile) step of the stddev reduction.

    x_ref:    (g, mc_tile, lane_tile)  input features (any float dtype)
    feat_ref: (mc_tile, 1) f32         running sum of std over the lane axis
                                       (same block for every lane step -> accumulator)
    """
    t = pl.program_id(1)

    @pl.when(t == 0)
    def _init():
        feat_ref[...] = jnp.zeros_like(feat_ref)

    x = x_ref[...].astype(jnp.float32)                 # (g, mc_t, TL)
    mean = jnp.mean(x, axis=0, keepdims=True)          # (1, mc_t, TL)
    var = jnp.mean(jnp.square(x - mean), axis=0)       # (mc_t, TL)  biased var over group
    std = jnp.sqrt(var + eps)                          # (mc_t, TL)
    feat_ref[...] += jnp.sum(std, axis=-1, keepdims=True)   # partial (chan,spatial) sum

    @pl.when(t == pl.num_programs(1) - 1)
    def _finalize():
        feat_ref[...] = feat_ref[...] * inv_count      # sum -> mean over cc*h*w


def _pick_lane_tile(lane_len):
    """Largest nice lane tile (multiple of 128) that divides lane_len."""
    if lane_len % 128 != 0 or lane_len <= 2048:
        return lane_len                                # single full-extent block
    for cand in (2048, 1024, 512, 256, 128):
        if lane_len % cand == 0:
            return cand
    return lane_len


def _pick_mc_tile(mc):
    """Tile the independent (subgroup * channel_group) axis when it is large."""
    if mc > 8 and mc % 8 == 0:
        for cand in (32, 16, 8):
            if mc % cand == 0:
                return cand
    return mc                                          # full extent (always legal)


def mod_mb_stddev_layer(x, group_size=4, channel_groups=1, eps=1e-8):
    """Pallas implementation of ModMBStddevLayer.forward (sync_std=False path).

    Args:
        x: (N, C, H, W) array (NCHW, like the PyTorch module).
    Returns:
        (N, C + channel_groups, H, W) array, same dtype as x.
    """
    n, c, h, w = x.shape
    assert n <= group_size or n % group_size == 0, (
        f"Batch size {n} must be <= group size {group_size} or divisible by it.")
    assert c % channel_groups == 0, (
        f"channel_groups ({channel_groups}) must divide channels ({c}).")

    g = min(n, group_size)
    m = n // g                       # batch sub-groups
    cg = channel_groups
    cc = c // cg                     # channels per channel-group
    mc = m * cg
    lane_len = cc * h * w            # lane-dense reduction axis (chan * spatial)

    # (N, C, H, W) -> (g, m*cg, cc*h*w): pure flat reshape (row-major compatible).
    x3 = x.reshape(g, mc, lane_len)

    mc_tile = _pick_mc_tile(mc)
    lane_tile = _pick_lane_tile(lane_len)
    grid = (mc // mc_tile, lane_len // lane_tile)

    kernel = functools.partial(
        _modmbstd_kernel, inv_count=1.0 / float(lane_len), eps=eps)

    feat = pl.pallas_call(
        kernel,
        out_shape=jax.ShapeDtypeStruct((mc, 1), jnp.float32),
        grid=grid,
        in_specs=[pl.BlockSpec((g, mc_tile, lane_tile), lambda r, t: (0, r, t))],
        out_specs=pl.BlockSpec((mc_tile, 1), lambda r, t: (r, 0)),
        compiler_params=pltpu.CompilerParams(
            dimension_semantics=("parallel", "arbitrary"),
            vmem_limit_bytes=32 * 1024 * 1024,
        ),
    )(x3)                                              # (mc, 1)

    # feat row r corresponds to (m_idx, cg_idx) with r = m_idx * cg + cg_idx.
    feat = feat.reshape(m, cg)
    # torch `y.repeat(group_size, 1, h, w)`: output batch b uses feat[b % m].
    feat = jnp.tile(feat, (g, 1)).astype(x.dtype)      # (n, cg)
    feat_map = jnp.broadcast_to(feat[:, :, None, None], (n, cg, h, w))

    # Pass-through copy + concat handled by XLA (fusable, HBM-roofline).
    return jnp.concatenate([x, feat_map], axis=1)


def _reference_numpy(x, group_size=4, channel_groups=1, eps=1e-8):
    """Pure numpy reference mirroring the PyTorch forward."""
    x = np.asarray(x, dtype=np.float32)
    n, c, h, w = x.shape
    g = min(n, group_size)
    y = x.reshape(g, -1, channel_groups, c // channel_groups, h, w)
    var = y.var(axis=0, ddof=0)
    std = np.sqrt(var + eps)
    feat = std.mean(axis=(2, 3, 4), keepdims=True)[:, :, 0]     # (m, cg, 1, 1)
    feat = np.tile(feat, (g, 1, h, w))                          # (n, cg, h, w)
    return np.concatenate([x, feat], axis=1)


if __name__ == "__main__":
    key = jax.random.PRNGKey(0)

    # Small case (single-tile path): N=2, C=4, 16x16.
    N, C, H, W = 2, 4, 16, 16
    x = jax.random.normal(key, (N, C, H, W), dtype=jnp.float32)
    out = mod_mb_stddev_layer(x, group_size=4, channel_groups=1, eps=1e-8)
    out = jax.block_until_ready(out)
    ref = _reference_numpy(np.asarray(x), group_size=4, channel_groups=1, eps=1e-8)
    assert out.shape == (N, C + 1, H, W), out.shape
    np.testing.assert_allclose(np.asarray(out), ref, rtol=1e-5, atol=1e-5)

    # Larger case exercising the tiled/pipelined reduction and channel_groups > 1.
    key2 = jax.random.PRNGKey(1)
    N2, C2, H2, W2, CG2 = 8, 16, 32, 32, 2
    x2 = jax.random.normal(key2, (N2, C2, H2, W2), dtype=jnp.float32)
    out2 = mod_mb_stddev_layer(x2, group_size=4, channel_groups=CG2, eps=1e-8)
    out2 = jax.block_until_ready(out2)
    ref2 = _reference_numpy(np.asarray(x2), group_size=4, channel_groups=CG2, eps=1e-8)
    assert out2.shape == (N2, C2 + CG2, H2, W2), out2.shape
    np.testing.assert_allclose(np.asarray(out2), ref2, rtol=1e-5, atol=1e-5)

    # TODO(synk): sync_std=True (distributed all-gather) path not implemented.
    print("KERNEL_OK")
</pallas_src>

<mosaic_0001>
module attributes {stable_mosaic.version = 11 : i64} {
  func.func @_modmbstd_kernel(%arg0: i32, %arg1: i32, %arg2: memref<2x1x1024xf32, #tpu.memory_space<vmem>>, %arg3: memref<1x1xf32, #tpu.memory_space<vmem>>) attributes {dimension_semantics = [#tpu.dimension_semantics<parallel>, #tpu.dimension_semantics<arbitrary>], iteration_bounds = array<i64: 1, 1>, scalar_prefetch = 0 : i64, scratch_operands = 0 : i64, tpu.core_type = #tpu.core_type<tc>, window_params = [{transform_indices = @transform_0, window_bounds = array<i64: 2, 1, 1024>}, {transform_indices = @transform_1, window_bounds = array<i64: 1, 1>}]} {
    %c0_i32 = arith.constant 0 : i32
    %0 = arith.cmpi eq, %arg1, %c0_i32 : i32
    %1 = arith.extui %0 : i1 to i32
    %c0_i32_0 = arith.constant 0 : i32
    %2 = arith.cmpi ne, %1, %c0_i32_0 : i32
    scf.if %2 {
      %cst_14 = arith.constant 0.000000e+00 : f32
      %25 = vector.broadcast %cst_14 : f32 to vector<1x1xf32>
      %c0_15 = arith.constant 0 : index
      %c0_16 = arith.constant 0 : index
      %26 = vector.load %arg3[%c0_15, %c0_16] : memref<1x1xf32, #tpu.memory_space<vmem>>, vector<1x1xf32>
      tpu.vector_store %arg3[%c0_15, %c0_16], %25 {strides = array<i32>} : memref<1x1xf32, #tpu.memory_space<vmem>>, vector<1x1xf32>,
    } else {
    }
    %c0 = arith.constant 0 : index
    %c0_1 = arith.constant 0 : index
    %c0_2 = arith.constant 0 : index
    %3 = vector.load %arg2[%c0, %c0_1, %c0_2] : memref<2x1x1024xf32, #tpu.memory_space<vmem>>, vector<2x1x1024xf32>
    %cst = arith.constant dense<0.000000e+00> : vector<1x1024xf32>
    %4 = vector.multi_reduction <add>, %3, %cst [0] : vector<2x1x1024xf32> to vector<1x1024xf32>
    %5 = vector.shape_cast %4 : vector<1x1024xf32> to vector<1x1x1024xf32>
    %cst_3 = arith.constant 2.000000e+00 : f32
    %6 = vector.broadcast %cst_3 : f32 to vector<1x1x1024xf32>
    %7 = arith.divf %5, %6 : vector<1x1x1024xf32>
    %8 = vector.broadcast %7 : vector<1x1x1024xf32> to vector<2x1x1024xf32>
    %9 = arith.subf %3, %8 : vector<2x1x1024xf32>
    %10 = arith.mulf %9, %9 : vector<2x1x1024xf32>
    %cst_4 = arith.constant dense<0.000000e+00> : vector<1x1024xf32>
    %11 = vector.multi_reduction <add>, %10, %cst_4 [0] : vector<2x1x1024xf32> to vector<1x1024xf32>
    %cst_5 = arith.constant 2.000000e+00 : f32
    %12 = vector.broadcast %cst_5 : f32 to vector<1x1024xf32>
    %13 = arith.divf %11, %12 : vector<1x1024xf32>
    %cst_6 = arith.constant 9.99999993E-9 : f32
    %14 = vector.broadcast %cst_6 : f32 to vector<1x1024xf32>
    %15 = arith.addf %13, %14 : vector<1x1024xf32>
    %16 = math.sqrt %15 : vector<1x1024xf32>
    %c0_7 = arith.constant 0 : index
    %c0_8 = arith.constant 0 : index
    %17 = vector.load %arg3[%c0_7, %c0_8] : memref<1x1xf32, #tpu.memory_space<vmem>>, vector<1x1xf32>
    %cst_9 = arith.constant dense<0.000000e+00> : vector<1xf32>
    %18 = vector.multi_reduction <add>, %16, %cst_9 [1] : vector<1x1024xf32> to vector<1xf32>
    %19 = vector.shape_cast %18 : vector<1xf32> to vector<1x1xf32>
    %20 = arith.addf %17, %19 : vector<1x1xf32>
    %c0_10 = arith.constant 0 : index
    %c0_11 = arith.constant 0 : index
    %21 = vector.load %arg3[%c0_10, %c0_11] : memref<1x1xf32, #tpu.memory_space<vmem>>, vector<1x1xf32>
    tpu.vector_store %arg3[%c0_10, %c0_11], %20 {strides = array<i32>} : memref<1x1xf32, #tpu.memory_space<vmem>>, vector<1x1xf32>,
    %c0_i32_12 = arith.constant 0 : i32
    %22 = arith.cmpi eq, %arg1, %c0_i32_12 : i32
    %23 = arith.extui %22 : i1 to i32
    %c0_i32_13 = arith.constant 0 : i32
    %24 = arith.cmpi ne, %23, %c0_i32_13 : i32
    scf.if %24 {
      %c0_14 = arith.constant 0 : index
      %c0_15 = arith.constant 0 : index
      %25 = vector.load %arg3[%c0_14, %c0_15] : memref<1x1xf32, #tpu.memory_space<vmem>>, vector<1x1xf32>
      %cst_16 = arith.constant 9.765625E-4 : f32
      %26 = vector.broadcast %cst_16 : f32 to vector<1x1xf32>
      %27 = arith.mulf %25, %26 : vector<1x1xf32>
      %c0_17 = arith.constant 0 : index
      %c0_18 = arith.constant 0 : index
      %28 = vector.load %arg3[%c0_17, %c0_18] : memref<1x1xf32, #tpu.memory_space<vmem>>, vector<1x1xf32>
      tpu.vector_store %arg3[%c0_17, %c0_18], %27 {strides = array<i32>} : memref<1x1xf32, #tpu.memory_space<vmem>>, vector<1x1xf32>,
    } else {
    }
    return
  }
  func.func @transform_0(%arg0: i32, %arg1: i32) -> (i32, i32, i32) {
    %c0_i32 = arith.constant 0 : i32
    %c0_i32_0 = arith.constant 0 : i32
    return %c0_i32, %arg0, %arg1 : i32, i32, i32
  }
  func.func @transform_1(%arg0: i32, %arg1: i32) -> (i32, i32) {
    %c0_i32 = arith.constant 0 : i32
    %c0_i32_0 = arith.constant 0 : i32
    return %arg0, %c0_i32 : i32, i32
  }
}

</mosaic_0001>

<llo_original>
// kernel: tpu_custom_call.1
$region0: #{tpu_custom_call.1}
  #allocation0 [shape = 'u32[]', space=smem, size = 0x4, offset = 0x4, fixed_abs, tag = 'smem constant byte address 0x4 - core index']
  #allocation1 [shape = 'u32[144,128]{1,0:T(1,128)}', space=vmem, size = 0x12000, scoped, tag = 'internal scratch']
  %s0 = inlined_call_operand.hbm [shape: f32[2,1,1024], index: 0, kind: input, shape index: {}]
  %s1 = inlined_call_operand.hbm [shape: f32[1,1], index: 1, kind: output, shape index: {}]
  %s2 = sld [smem:[#allocation0]]
  $region26: #{tpu_custom_call.1} parent=0
    _
  %s4 = ssub.s32 1, %s2
  %s5 = scalar_select 0, %s4, %s2
  $region1: #{tpu_custom_call.1} parent=0
    #allocation2 [shape = 'u8[8192]{0}', space=vmem, size = 0x2000, scoped, tag = 'input window, operand 0, single buffered']
    #allocation3 [shape = 's32[1]{0}', space=sflag, size = 0x4, scoped, tag = 'scoped memory for tpu_custom_call.1']
    #allocation4 [shape = 's32[1]{0}', space=sflag, size = 0x4, scoped, tag = 'scoped memory for tpu_custom_call.1']
    #allocation5 [shape = 'u8[512]{0}', space=vmem, size = 0x400, scoped, tag = 'output window, operand 0, single buffered']
    %6 = vsyncpa [#allocation3], 0
    %7 = vsyncpa [#allocation4], 0
    // Predicated region
    $region2: #{tpu_custom_call.1} parent=1 // pred_check
      _
    $region3: #{tpu_custom_call.1} parent=1 // pred_check_branch
      %9 = sbr.rel (0) target = $region5
    $region4: #{tpu_custom_call.1} parent=1 // pred_region
      %s11 = ssub.s32 256, 256
      %12 = vsyncadd [#allocation3], %s11
      %s13 = sshll.u32 [#allocation2], 4
      %s14 = int_to_ptr.vmem [resolvable:$true] %s13
      %19 = dma.hbm_to_vmem [thread:$0]  %s0, 256, %s14, [#allocation3], 128, 128, 8
    $region5: #{tpu_custom_call.1} parent=1 // pred_fallthru
      _
    // Predicated region
    $region6: #{tpu_custom_call.1} parent=1 // pred_check
      _
    $region7: #{tpu_custom_call.1} parent=1 // pred_check_branch
      %21 = sbr.rel (0) target = $region9
    $region8: #{tpu_custom_call.1} parent=1 // pred_region
      %22 = dma.done [#allocation3], 256
    $region9: #{tpu_custom_call.1} parent=1 // pred_fallthru
      _
    %p23 = scmp.eq.s32.totalorder 0, 0
    // Predicated region
    $region10: #{tpu_custom_call.1} parent=1 // pred_check
      %p24 = pneg %p23
    $region11: #{tpu_custom_call.1} parent=1 // pred_check_branch
      %26 = sbr.rel (%p24) target = $region13
    $region12: #{tpu_custom_call.1} parent=1 // pred_region
      %vm27 = vcmask 0
      %28 = vst.msk [vmem:[#allocation5] sm:$0x1] %vm27, 0.0
    $region13: #{tpu_custom_call.1} parent=1 // pred_fallthru
      _
    %v29 = vld [vmem:[#allocation2] sm:$0xff]
    %v30 = vld [vmem:[#allocation2 + $0x8] sm:$0xff]
    %v33 = vlaneseq
    %v34 = vshrl.u32 %v33, 7
    %v35 = vsub.s32 0, %v34
    %v36 = vrot.slane %v29, %v35
    %v37 = vlaneseq
    %v38 = vshrl.u32 %v37, 7
    %v39 = vsub.s32 1, %v38
    %v40 = vrot.slane %v29, %v39
    %v41 = vlaneseq
    %v42 = vshrl.u32 %v41, 7
    %v43 = vsub.s32 2, %v42
    %v44 = vrot.slane %v29, %v43
    %v45 = vlaneseq
    %v46 = vshrl.u32 %v45, 7
    %v47 = vsub.s32 3, %v46
    %v48 = vrot.slane %v29, %v47
    %v49 = vlaneseq
    %v50 = vshrl.u32 %v49, 7
    %v51 = vsub.s32 4, %v50
    %v52 = vrot.slane %v29, %v51
    %v53 = vlaneseq
    %v54 = vshrl.u32 %v53, 7
    %v55 = vsub.s32 5, %v54
    %v56 = vrot.slane %v29, %v55
    %v57 = vlaneseq
    %v58 = vshrl.u32 %v57, 7
    %v59 = vsub.s32 6, %v58
    %v60 = vrot.slane %v29, %v59
    %v61 = vlaneseq
    %v62 = vshrl.u32 %v61, 7
    %v63 = vsub.s32 7, %v62
    %v64 = vrot.slane %v29, %v63
    %v65 = vlaneseq
    %v66 = vshrl.u32 %v65, 7
    %v67 = vsub.s32 0, %v66
    %v68 = vrot.slane %v30, %v67
    %v69 = vlaneseq
    %v70 = vshrl.u32 %v69, 7
    %v71 = vsub.s32 1, %v70
    %v72 = vrot.slane %v30, %v71
    %v73 = vlaneseq
    %v74 = vshrl.u32 %v73, 7
    %v75 = vsub.s32 2, %v74
    %v76 = vrot.slane %v30, %v75
    %v77 = vlaneseq
    %v78 = vshrl.u32 %v77, 7
    %v79 = vsub.s32 3, %v78
    %v80 = vrot.slane %v30, %v79
    %v81 = vlaneseq
    %v82 = vshrl.u32 %v81, 7
    %v83 = vsub.s32 4, %v82
    %v84 = vrot.slane %v30, %v83
    %v85 = vlaneseq
    %v86 = vshrl.u32 %v85, 7
    %v87 = vsub.s32 5, %v86
    %v88 = vrot.slane %v30, %v87
    %v89 = vlaneseq
    %v90 = vshrl.u32 %v89, 7
    %v91 = vsub.s32 6, %v90
    %v92 = vrot.slane %v30, %v91
    %v93 = vlaneseq
    %v94 = vshrl.u32 %v93, 7
    %v95 = vsub.s32 7, %v94
    %v96 = vrot.slane %v30, %v95
    %vm113 = vcmask 1040384
    %v114 = vsel %vm113, %v36, 0.0
    %v115 = vsel %vm113, %v68, 0.0
    %v116 = vadd.f32 %v114, %v115
    %v117 = vsel %vm113, %v40, 0.0
    %v118 = vsel %vm113, %v72, 0.0
    %v119 = vadd.f32 %v117, %v118
    %v120 = vsel %vm113, %v44, 0.0
    %v121 = vsel %vm113, %v76, 0.0
    %v122 = vadd.f32 %v120, %v121
    %v123 = vsel %vm113, %v48, 0.0
    %v124 = vsel %vm113, %v80, 0.0
    %v125 = vadd.f32 %v123, %v124
    %v126 = vsel %vm113, %v52, 0.0
    %v127 = vsel %vm113, %v84, 0.0
    %v128 = vadd.f32 %v126, %v127
    %v129 = vsel %vm113, %v56, 0.0
    %v130 = vsel %vm113, %v88, 0.0
    %v131 = vadd.f32 %v129, %v130
    %v132 = vsel %vm113, %v60, 0.0
    %v133 = vsel %vm113, %v92, 0.0
    %v134 = vadd.f32 %v132, %v133
    %v135 = vsel %vm113, %v64, 0.0
    %v136 = vsel %vm113, %v96, 0.0
    %v137 = vadd.f32 %v135, %v136
    %v138 = vrcp.pop 2.0
    %v139 = vmul.f32 %v116, %v138
    %v140 = vmul.f32 %v119, %v138
    %v141 = vmul.f32 %v122, %v138
    %v142 = vmul.f32 %v125, %v138
    %v143 = vmul.f32 %v128, %v138
    %v144 = vmul.f32 %v131, %v138
    %v145 = vmul.f32 %v134, %v138
    %v146 = vmul.f32 %v137, %v138
    %v155 = vcombine.low %v139, %v140
    %v156 = vcombine.low %v141, %v142
    %v157 = vcombine.low %v143, %v144
    %v158 = vcombine.low %v145, %v146
    %v160 = vunpack.c.l.s4 1966171168
    %v161 = vunpack.c.0.s8 %v160
    %v162 = vlaneseq
    %v163 = vshrl.u32 %v162, 7
    %v164 = vsub.s32 %v161, %v163
    %v165 = vrot.slane %v155, %v164
    %v167 = vunpack.c.l.s4 1966171168
    %v168 = vunpack.c.0.s8 %v167
    %v169 = vlaneseq
    %v170 = vshrl.u32 %v169, 7
    %v171 = vsub.s32 %v168, %v170
    %v172 = vrot.slane %v156, %v171
    %v174 = vunpack.c.l.s4 1966171168
    %v175 = vunpack.c.0.s8 %v174
    %v176 = vlaneseq
    %v177 = vshrl.u32 %v176, 7
    %v178 = vsub.s32 %v175, %v177
    %v179 = vrot.slane %v157, %v178
    %v181 = vunpack.c.l.s4 1966171168
    %v182 = vunpack.c.0.s8 %v181
    %v183 = vlaneseq
    %v184 = vshrl.u32 %v183, 7
    %v185 = vsub.s32 %v182, %v184
    %v186 = vrot.slane %v158, %v185
    %v187 = vcombine.low %v165, %v172
    %v188 = vcombine.low %v179, %v186
    %v190 = vunpack.c.l.s4 1966171168
    %v191 = vunpack.c.0.s8 %v190
    %v192 = vlaneseq
    %v193 = vshrl.u32 %v192, 7
    %v194 = vsub.s32 %v191, %v193
    %v195 = vrot.slane %v187, %v194
    %v197 = vunpack.c.l.s4 1966171168
    %v198 = vunpack.c.0.s8 %v197
    %v199 = vlaneseq
    %v200 = vshrl.u32 %v199, 7
    %v201 = vsub.s32 %v198, %v200
    %v202 = vrot.slane %v188, %v201
    %v203 = vcombine.low %v195, %v202
    %v205 = vsub.f32 %v29, %v203
    %v206 = vsub.f32 %v30, %v203
    %v207 = vmul.f32 %v205, %v205
    %v208 = vmul.f32 %v206, %v206
    %v211 = vlaneseq
    %v212 = vshrl.u32 %v211, 7
    %v213 = vsub.s32 0, %v212
    %v214 = vrot.slane %v207, %v213
    %v215 = vlaneseq
    %v216 = vshrl.u32 %v215, 7
    %v217 = vsub.s32 1, %v216
    %v218 = vrot.slane %v207, %v217
    %v219 = vlaneseq
    %v220 = vshrl.u32 %v219, 7
    %v221 = vsub.s32 2, %v220
    %v222 = vrot.slane %v207, %v221
    %v223 = vlaneseq
    %v224 = vshrl.u32 %v223, 7
    %v225 = vsub.s32 3, %v224
    %v226 = vrot.slane %v207, %v225
    %v227 = vlaneseq
    %v228 = vshrl.u32 %v227, 7
    %v229 = vsub.s32 4, %v228
    %v230 = vrot.slane %v207, %v229
    %v231 = vlaneseq
    %v232 = vshrl.u32 %v231, 7
    %v233 = vsub.s32 5, %v232
    %v234 = vrot.slane %v207, %v233
    %v235 = vlaneseq
    %v236 = vshrl.u32 %v235, 7
    %v237 = vsub.s32 6, %v236
    %v238 = vrot.slane %v207, %v237
    %v239 = vlaneseq
    %v240 = vshrl.u32 %v239, 7
    %v241 = vsub.s32 7, %v240
    %v242 = vrot.slane %v207, %v241
    %v243 = vlaneseq
    %v244 = vshrl.u32 %v243, 7
    %v245 = vsub.s32 0, %v244
    %v246 = vrot.slane %v208, %v245
    %v247 = vlaneseq
    %v248 = vshrl.u32 %v247, 7
    %v249 = vsub.s32 1, %v248
    %v250 = vrot.slane %v208, %v249
    %v251 = vlaneseq
    %v252 = vshrl.u32 %v251, 7
    %v253 = vsub.s32 2, %v252
    %v254 = vrot.slane %v208, %v253
    %v255 = vlaneseq
    %v256 = vshrl.u32 %v255, 7
    %v257 = vsub.s32 3, %v256
    %v258 = vrot.slane %v208, %v257
    %v259 = vlaneseq
    %v260 = vshrl.u32 %v259, 7
    %v261 = vsub.s32 4, %v260
    %v262 = vrot.slane %v208, %v261
    %v263 = vlaneseq
    %v264 = vshrl.u32 %v263, 7
    %v265 = vsub.s32 5, %v264
    %v266 = vrot.slane %v208, %v265
    %v267 = vlaneseq
    %v268 = vshrl.u32 %v267, 7
    %v269 = vsub.s32 6, %v268
    %v270 = vrot.slane %v208, %v269
    %v271 = vlaneseq
    %v272 = vshrl.u32 %v271, 7
    %v273 = vsub.s32 7, %v272
    %v274 = vrot.slane %v208, %v273
    %v291 = vsel %vm113, %v214, 0.0
    %v292 = vsel %vm113, %v246, 0.0
    %v293 = vadd.f32 %v291, %v292
    %v294 = vsel %vm113, %v218, 0.0
    %v295 = vsel %vm113, %v250, 0.0
    %v296 = vadd.f32 %v294, %v295
    %v297 = vsel %vm113, %v222, 0.0
    %v298 = vsel %vm113, %v254, 0.0
    %v299 = vadd.f32 %v297, %v298
    %v300 = vsel %vm113, %v226, 0.0
    %v301 = vsel %vm113, %v258, 0.0
    %v302 = vadd.f32 %v300, %v301
    %v303 = vsel %vm113, %v230, 0.0
    %v304 = vsel %vm113, %v262, 0.0
    %v305 = vadd.f32 %v303, %v304
    %v306 = vsel %vm113, %v234, 0.0
    %v307 = vsel %vm113, %v266, 0.0
    %v308 = vadd.f32 %v306, %v307
    %v309 = vsel %vm113, %v238, 0.0
    %v310 = vsel %vm113, %v270, 0.0
    %v311 = vadd.f32 %v309, %v310
    %v312 = vsel %vm113, %v242, 0.0
    %v313 = vsel %vm113, %v274, 0.0
    %v314 = vadd.f32 %v312, %v313
    %v315 = vmul.f32 %v293, %v138
    %v316 = vmul.f32 %v296, %v138
    %v317 = vmul.f32 %v299, %v138
    %v318 = vmul.f32 %v302, %v138
    %v319 = vmul.f32 %v305, %v138
    %v320 = vmul.f32 %v308, %v138
    %v321 = vmul.f32 %v311, %v138
    %v322 = vmul.f32 %v314, %v138
    %v323 = vadd.f32 %v315, 1e-08
    %v324 = vadd.f32 %v316, 1e-08
    %v325 = vadd.f32 %v317, 1e-08
    %v326 = vadd.f32 %v318, 1e-08
    %v327 = vadd.f32 %v319, 1e-08
    %v328 = vadd.f32 %v320, 1e-08
    %v329 = vadd.f32 %v321, 1e-08
    %v330 = vadd.f32 %v322, 1e-08
    %v331 = vrsqrt.pop %v323
    %v332 = vmul.f32 %v323, %v331
    %vm333 = vcmp.eq.f32.partialorder %v323, inf
    %v334 = vsel %vm333, %v323, %v332
    %vm335 = vcmp.eq.f32.partialorder %v323, 0.0
    %v336 = vand.u32 %v323, 2147483648
    %v337 = vsel %vm335, %v336, %v334
    %v338 = vrsqrt.pop %v324
    %v339 = vmul.f32 %v324, %v338
    %vm340 = vcmp.eq.f32.partialorder %v324, inf
    %v341 = vsel %vm340, %v324, %v339
    %vm342 = vcmp.eq.f32.partialorder %v324, 0.0
    %v343 = vand.u32 %v324, 2147483648
    %v344 = vsel %vm342, %v343, %v341
    %v345 = vrsqrt.pop %v325
    %v346 = vmul.f32 %v325, %v345
    %vm347 = vcmp.eq.f32.partialorder %v325, inf
    %v348 = vsel %vm347, %v325, %v346
    %vm349 = vcmp.eq.f32.partialorder %v325, 0.0
    %v350 = vand.u32 %v325, 2147483648
    %v351 = vsel %vm349, %v350, %v348
    %v352 = vrsqrt.pop %v326
    %v353 = vmul.f32 %v326, %v352
    %vm354 = vcmp.eq.f32.partialorder %v326, inf
    %v355 = vsel %vm354, %v326, %v353
    %vm356 = vcmp.eq.f32.partialorder %v326, 0.0
    %v357 = vand.u32 %v326, 2147483648
    %v358 = vsel %vm356, %v357, %v355
    %v359 = vrsqrt.pop %v327
    %v360 = vmul.f32 %v327, %v359
    %vm361 = vcmp.eq.f32.partialorder %v327, inf
    %v362 = vsel %vm361, %v327, %v360
    %vm363 = vcmp.eq.f32.partialorder %v327, 0.0
    %v364 = vand.u32 %v327, 2147483648
    %v365 = vsel %vm363, %v364, %v362
    %v366 = vrsqrt.pop %v328
    %v367 = vmul.f32 %v328, %v366
    %vm368 = vcmp.eq.f32.partialorder %v328, inf
    %v369 = vsel %vm368, %v328, %v367
    %vm370 = vcmp.eq.f32.partialorder %v328, 0.0
    %v371 = vand.u32 %v328, 2147483648
    %v372 = vsel %vm370, %v371, %v369
    %v373 = vrsqrt.pop %v329
    %v374 = vmul.f32 %v329, %v373
    %vm375 = vcmp.eq.f32.partialorder %v329, inf
    %v376 = vsel %vm375, %v329, %v374
    %vm377 = vcmp.eq.f32.partialorder %v329, 0.0
    %v378 = vand.u32 %v329, 2147483648
    %v379 = vsel %vm377, %v378, %v376
    %v380 = vrsqrt.pop %v330
    %v381 = vmul.f32 %v330, %v380
    %vm382 = vcmp.eq.f32.partialorder %v330, inf
    %v383 = vsel %vm382, %v330, %v381
    %vm384 = vcmp.eq.f32.partialorder %v330, 0.0
    %v385 = vand.u32 %v330, 2147483648
    %v386 = vsel %vm384, %v385, %v383
    %v387 = vld [vmem:[#allocation5] sm:$0x1]
    %v388 = vsel %vm113, %v337, 0.0
    %v389 = vsel %vm113, %v344, 0.0
    %v390 = vadd.f32 %v388, %v389
    %v391 = vsel %vm113, %v351, 0.0
    %v392 = vadd.f32 %v390, %v391
    %v393 = vsel %vm113, %v358, 0.0
    %v394 = vadd.f32 %v392, %v393
    %v395 = vsel %vm113, %v365, 0.0
    %v396 = vadd.f32 %v394, %v395
    %v397 = vsel %vm113, %v372, 0.0
    %v398 = vadd.f32 %v396, %v397
    %v399 = vsel %vm113, %v379, 0.0
    %v400 = vadd.f32 %v398, %v399
    %v401 = vsel %vm113, %v386, 0.0
    %v402 = vadd.f32 %v400, %v401
    %403 = vadd.xlane.f32.xlu0 %v402
    %v404 = vpop.xlane.xlu0 %403
    %v405 = vadd.f32 %v387, %v404
    %vm406 = vcmask 0
    %407 = vst.msk [vmem:[#allocation5] sm:$0x1] %vm406, %v405
    // Predicated region
    $region14: #{tpu_custom_call.1} parent=1 // pred_check
      %p408 = pneg %p23
    $region15: #{tpu_custom_call.1} parent=1 // pred_check_branch
      %410 = sbr.rel (%p408) target = $region17
    $region16: #{tpu_custom_call.1} parent=1 // pred_region
      %v411 = vld [vmem:[#allocation5] sm:$0x1]
      %v412 = vmul.f32 %v411, 0.0009765625
      %413 = vst.msk [vmem:[#allocation5] sm:$0x1] %vm406, %v412
    $region17: #{tpu_custom_call.1} parent=1 // pred_fallthru
      _
    // Predicated region
    $region18: #{tpu_custom_call.1} parent=1 // pred_check
      _
    $region19: #{tpu_custom_call.1} parent=1 // pred_check_branch
      %415 = sbr.rel (0) target = $region21
    $region20: #{tpu_custom_call.1} parent=1 // pred_region
      %s417 = ssub.s32 16, 16
      %418 = vsyncadd [#allocation4], %s417
      %s420 = sshll.u32 [#allocation5], 4
      %s421 = int_to_ptr.vmem [resolvable:$true] %s420
      %423 = dma.vmem_to_hbm [thread:$0]  %s421, 16, %s1, [#allocation4]
    $region21: #{tpu_custom_call.1} parent=1 // pred_fallthru
      _
    // Predicated region
    $region22: #{tpu_custom_call.1} parent=1 // pred_check
      _
    $region23: #{tpu_custom_call.1} parent=1 // pred_check_branch
      %425 = sbr.rel (0) target = $region25
    $region24: #{tpu_custom_call.1} parent=1 // pred_region
      %426 = dma.done [#allocation4], 16
    $region25: #{tpu_custom_call.1} parent=1 // pred_fallthru
      _
    %427 = vsyncpa [#allocation3], 1
    %428 = vsyncpa [#allocation4], 1

</llo_original>
